<compile_context>
chip_gen: v7x
topology: tpu7x:2x2x1
jax: 0.10.0
libtpu: 0.0.40
codegen_flags: <defaults>
</compile_context>

<pallas_src>
import functools
import math

import jax
import jax.numpy as jnp
from jax import lax
from jax.experimental import pallas as pl
from jax.experimental.pallas import tpu as pltpu


def _round_up(n, m=128):
    return ((n + m - 1) // m) * m


def seqrnn_kernel(x_ref, wih_ref, whh_ref, b_ref, wlin_ref, blin_ref, out_ref,
                  *, seq_len, out_dim):
    """RNN recurrence -> last hidden -> linear head -> masked softmax."""
    # Hoisted input projection for ALL timesteps: (seq, V_pad) @ (V_pad, H_pad).
    x_proj = (jnp.dot(x_ref[...], wih_ref[...],
                      preferred_element_type=jnp.float32)
              + b_ref[...])                                      # (seq, H_pad)

    whh = whh_ref[...]                                           # (H_pad, H_pad), load once
    h_pad = whh.shape[1]

    # h0 = zeros (matches torch.zeros(1, 1, hidden_size)); stays in vregs.
    h0 = jnp.zeros((1, h_pad), jnp.float32)

    def step(x_t, h):
        return jnp.tanh(x_t + jnp.dot(h, whh, preferred_element_type=jnp.float32))

    if seq_len <= 32:
        # Tiny static sequence: full unroll (no loop-carried VMEM traffic).
        h = h0
        for t in range(seq_len):
            h = step(x_proj[t:t + 1, :], h)
    else:
        # Longer sequences: bounded unroll to cap code size / vreg pressure.
        def body(t, h):
            x_t = lax.dynamic_slice_in_dim(x_proj, t, 1, axis=0)
            return step(x_t, h)
        h = lax.fori_loop(0, seq_len, body, h0, unroll=8)

    logits = (jnp.dot(h, wlin_ref[...],
                      preferred_element_type=jnp.float32)
              + blin_ref[...])                                   # (1, O_pad)

    # Softmax over the real `out_dim` classes only (padded lanes masked out).
    lane = lax.broadcasted_iota(jnp.int32, logits.shape, 1)
    mask = lane < out_dim
    lm = jnp.where(mask, logits, jnp.full_like(logits, -1e30))
    m = jnp.max(lm, axis=-1, keepdims=True)
    e = jnp.where(mask, jnp.exp(lm - m), 0.0)
    s = jnp.sum(e, axis=-1, keepdims=True)
    out_ref[...] = e * pl.reciprocal(s, approx=False)


def pad_params(params):
    """One-time cost: transpose + zero-pad weights to lane-dense (x128) shapes."""
    w_ih, w_hh, b_ih, b_hh, w_lin, b_lin = params
    hidden, vocab = w_ih.shape
    out_dim = w_lin.shape[0]
    v_pad, h_pad, o_pad = _round_up(vocab), _round_up(hidden), _round_up(out_dim)

    wih_t = jnp.zeros((v_pad, h_pad), jnp.float32).at[:vocab, :hidden].set(w_ih.T)
    whh_t = jnp.zeros((h_pad, h_pad), jnp.float32).at[:hidden, :hidden].set(w_hh.T)
    b_comb = jnp.zeros((1, h_pad), jnp.float32).at[0, :hidden].set(b_ih + b_hh)
    wlin_t = jnp.zeros((h_pad, o_pad), jnp.float32).at[:hidden, :out_dim].set(w_lin.T)
    blin2 = jnp.zeros((1, o_pad), jnp.float32).at[0, :out_dim].set(b_lin)
    padded = (wih_t, whh_t, b_comb, wlin_t, blin2)
    # Realize once so no per-call recomputation of the padded weights happens.
    padded = tuple(jax.block_until_ready(p) for p in padded)
    return padded, out_dim


@functools.partial(jax.jit, static_argnames=("out_dim",))
def _seqrnn_apply(x, wih_t, whh_t, b_comb, wlin_t, blin2, *, out_dim):
    """x: (1, seq, vocab) float32 (batch_first, batch == 1 per the module)."""
    _, seq_len, vocab = x.shape
    v_pad = wih_t.shape[0]
    o_pad = blin2.shape[1]

    # Only the small activation is padded per call; weights are pre-padded.
    xp = jnp.zeros((seq_len, v_pad), jnp.float32).at[:, :vocab].set(x[0])

    kernel = functools.partial(seqrnn_kernel, seq_len=seq_len, out_dim=out_dim)
    vmem_spec = pl.BlockSpec(memory_space=pltpu.MemorySpace.VMEM)

    out_padded = pl.pallas_call(
        kernel,
        out_shape=jax.ShapeDtypeStruct((1, o_pad), jnp.float32),
        in_specs=[vmem_spec] * 6,
        out_specs=vmem_spec,
    )(xp, wih_t, whh_t, b_comb, wlin_t, blin2)

    return out_padded[:, :out_dim]                               # (1, out_dim)


def seqrnn_forward(x, padded_params, out_dim):
    return _seqrnn_apply(x, *padded_params, out_dim=out_dim)


def seqrnn_reference(x, params):
    """Pure-JAX reference mirroring torch semantics (for a sanity check)."""
    w_ih, w_hh, b_ih, b_hh, w_lin, b_lin = params
    h = jnp.zeros((1, w_ih.shape[0]), jnp.float32)
    for t in range(x.shape[1]):
        x_t = x[:, t, :]                                         # (1, V)
        h = jnp.tanh(x_t @ w_ih.T + b_ih + h @ w_hh.T + b_hh)
    logits = h @ w_lin.T + b_lin
    return jax.nn.softmax(logits, axis=1)


def init_params(key, vocab_size, hidden_size, output_size):
    ks = jax.random.split(key, 6)
    kb = 1.0 / math.sqrt(hidden_size)   # nn.RNN / nn.Linear init bound
    u = lambda k, shape, b: jax.random.uniform(
        k, shape, minval=-b, maxval=b, dtype=jnp.float32)
    w_ih = u(ks[0], (hidden_size, vocab_size), kb)
    w_hh = u(ks[1], (hidden_size, hidden_size), kb)
    b_ih = u(ks[2], (hidden_size,), kb)
    b_hh = u(ks[3], (hidden_size,), kb)
    w_lin = u(ks[4], (output_size, hidden_size), kb)
    b_lin = u(ks[5], (output_size,), kb)
    return (w_ih, w_hh, b_ih, b_hh, w_lin, b_lin)


if __name__ == "__main__":
    vocab_size, hidden_size, output_size = 16, 32, 5
    batch, seq_len = 1, 8   # batch fixed at 1 by the module's h0

    key = jax.random.PRNGKey(0)
    k_param, k_x = jax.random.split(key)
    params = init_params(k_param, vocab_size, hidden_size, output_size)
    x = jax.random.normal(k_x, (batch, seq_len, vocab_size), dtype=jnp.float32)

    padded_params, out_dim = pad_params(params)   # one-time weight padding

    out = jax.block_until_ready(seqrnn_forward(x, padded_params, out_dim))
    ref = jax.block_until_ready(seqrnn_reference(x, params))

    assert out.shape == (batch, output_size), out.shape
    assert jnp.allclose(out, ref, atol=1e-5, rtol=1e-5), (out, ref)
    assert jnp.allclose(jnp.sum(out, axis=1), 1.0, atol=1e-5)

    print("KERNEL_OK")
</pallas_src>

<mosaic_0001>
module attributes {stable_mosaic.version = 11 : i64} {
  func.func @seqrnn_kernel(%arg0: memref<8x128xf32, #tpu.memory_space<vmem>>, %arg1: memref<128x128xf32, #tpu.memory_space<vmem>>, %arg2: memref<128x128xf32, #tpu.memory_space<vmem>>, %arg3: memref<1x128xf32, #tpu.memory_space<vmem>>, %arg4: memref<128x128xf32, #tpu.memory_space<vmem>>, %arg5: memref<1x128xf32, #tpu.memory_space<vmem>>, %arg6: memref<1x128xf32, #tpu.memory_space<vmem>>) attributes {dimension_semantics = [], scalar_prefetch = 0 : i64, scratch_operands = 0 : i64, tpu.core_type = #tpu.core_type<tc>} {
    %c0 = arith.constant 0 : index
    %c0_0 = arith.constant 0 : index
    %0 = vector.load %arg0[%c0, %c0_0] : memref<8x128xf32, #tpu.memory_space<vmem>>, vector<8x128xf32>
    %c0_1 = arith.constant 0 : index
    %c0_2 = arith.constant 0 : index
    %1 = vector.load %arg1[%c0_1, %c0_2] : memref<128x128xf32, #tpu.memory_space<vmem>>, vector<128x128xf32>
    %cst = arith.constant dense<0.000000e+00> : vector<8x128xf32>
    %2 = tpu.matmul %0, %1, %cst {dimension_numbers = #tpu.dot_dimension_numbers<[1], [0], [0], [1], [0, 0, 1, 1], [], []>} : vector<8x128xf32>, vector<128x128xf32>, vector<8x128xf32> -> vector<8x128xf32>
    %c0_3 = arith.constant 0 : index
    %c0_4 = arith.constant 0 : index
    %3 = vector.load %arg3[%c0_3, %c0_4] : memref<1x128xf32, #tpu.memory_space<vmem>>, vector<1x128xf32>
    %4 = vector.broadcast %3 : vector<1x128xf32> to vector<8x128xf32>
    %5 = arith.addf %2, %4 : vector<8x128xf32>
    %c0_5 = arith.constant 0 : index
    %c0_6 = arith.constant 0 : index
    %6 = vector.load %arg2[%c0_5, %c0_6] : memref<128x128xf32, #tpu.memory_space<vmem>>, vector<128x128xf32>
    %cst_7 = arith.constant 0.000000e+00 : f32
    %7 = vector.broadcast %cst_7 : f32 to vector<1x128xf32>
    %8 = vector.extract_strided_slice %5 {offsets = [0, 0], sizes = [1, 128], strides = [1, 1]} : vector<8x128xf32> to vector<1x128xf32>
    %cst_8 = arith.constant dense<0.000000e+00> : vector<1x128xf32>
    %9 = tpu.matmul %7, %6, %cst_8 {dimension_numbers = #tpu.dot_dimension_numbers<[1], [0], [0], [1], [0, 0, 1, 1], [], []>} : vector<1x128xf32>, vector<128x128xf32>, vector<1x128xf32> -> vector<1x128xf32>
    %10 = arith.addf %8, %9 : vector<1x128xf32>
    %11 = math.tanh %10 : vector<1x128xf32>
    %12 = vector.extract_strided_slice %5 {offsets = [1, 0], sizes = [1, 128], strides = [1, 1]} : vector<8x128xf32> to vector<1x128xf32>
    %cst_9 = arith.constant dense<0.000000e+00> : vector<1x128xf32>
    %13 = tpu.matmul %11, %6, %cst_9 {dimension_numbers = #tpu.dot_dimension_numbers<[1], [0], [0], [1], [0, 0, 1, 1], [], []>} : vector<1x128xf32>, vector<128x128xf32>, vector<1x128xf32> -> vector<1x128xf32>
    %14 = arith.addf %12, %13 : vector<1x128xf32>
    %15 = math.tanh %14 : vector<1x128xf32>
    %16 = vector.extract_strided_slice %5 {offsets = [2, 0], sizes = [1, 128], strides = [1, 1]} : vector<8x128xf32> to vector<1x128xf32>
    %cst_10 = arith.constant dense<0.000000e+00> : vector<1x128xf32>
    %17 = tpu.matmul %15, %6, %cst_10 {dimension_numbers = #tpu.dot_dimension_numbers<[1], [0], [0], [1], [0, 0, 1, 1], [], []>} : vector<1x128xf32>, vector<128x128xf32>, vector<1x128xf32> -> vector<1x128xf32>
    %18 = arith.addf %16, %17 : vector<1x128xf32>
    %19 = math.tanh %18 : vector<1x128xf32>
    %20 = vector.extract_strided_slice %5 {offsets = [3, 0], sizes = [1, 128], strides = [1, 1]} : vector<8x128xf32> to vector<1x128xf32>
    %cst_11 = arith.constant dense<0.000000e+00> : vector<1x128xf32>
    %21 = tpu.matmul %19, %6, %cst_11 {dimension_numbers = #tpu.dot_dimension_numbers<[1], [0], [0], [1], [0, 0, 1, 1], [], []>} : vector<1x128xf32>, vector<128x128xf32>, vector<1x128xf32> -> vector<1x128xf32>
    %22 = arith.addf %20, %21 : vector<1x128xf32>
    %23 = math.tanh %22 : vector<1x128xf32>
    %24 = vector.extract_strided_slice %5 {offsets = [4, 0], sizes = [1, 128], strides = [1, 1]} : vector<8x128xf32> to vector<1x128xf32>
    %cst_12 = arith.constant dense<0.000000e+00> : vector<1x128xf32>
    %25 = tpu.matmul %23, %6, %cst_12 {dimension_numbers = #tpu.dot_dimension_numbers<[1], [0], [0], [1], [0, 0, 1, 1], [], []>} : vector<1x128xf32>, vector<128x128xf32>, vector<1x128xf32> -> vector<1x128xf32>
    %26 = arith.addf %24, %25 : vector<1x128xf32>
    %27 = math.tanh %26 : vector<1x128xf32>
    %28 = vector.extract_strided_slice %5 {offsets = [5, 0], sizes = [1, 128], strides = [1, 1]} : vector<8x128xf32> to vector<1x128xf32>
    %cst_13 = arith.constant dense<0.000000e+00> : vector<1x128xf32>
    %29 = tpu.matmul %27, %6, %cst_13 {dimension_numbers = #tpu.dot_dimension_numbers<[1], [0], [0], [1], [0, 0, 1, 1], [], []>} : vector<1x128xf32>, vector<128x128xf32>, vector<1x128xf32> -> vector<1x128xf32>
    %30 = arith.addf %28, %29 : vector<1x128xf32>
    %31 = math.tanh %30 : vector<1x128xf32>
    %32 = vector.extract_strided_slice %5 {offsets = [6, 0], sizes = [1, 128], strides = [1, 1]} : vector<8x128xf32> to vector<1x128xf32>
    %cst_14 = arith.constant dense<0.000000e+00> : vector<1x128xf32>
    %33 = tpu.matmul %31, %6, %cst_14 {dimension_numbers = #tpu.dot_dimension_numbers<[1], [0], [0], [1], [0, 0, 1, 1], [], []>} : vector<1x128xf32>, vector<128x128xf32>, vector<1x128xf32> -> vector<1x128xf32>
    %34 = arith.addf %32, %33 : vector<1x128xf32>
    %35 = math.tanh %34 : vector<1x128xf32>
    %36 = vector.extract_strided_slice %5 {offsets = [7, 0], sizes = [1, 128], strides = [1, 1]} : vector<8x128xf32> to vector<1x128xf32>
    %cst_15 = arith.constant dense<0.000000e+00> : vector<1x128xf32>
    %37 = tpu.matmul %35, %6, %cst_15 {dimension_numbers = #tpu.dot_dimension_numbers<[1], [0], [0], [1], [0, 0, 1, 1], [], []>} : vector<1x128xf32>, vector<128x128xf32>, vector<1x128xf32> -> vector<1x128xf32>
    %38 = arith.addf %36, %37 : vector<1x128xf32>
    %39 = math.tanh %38 : vector<1x128xf32>
    %c0_16 = arith.constant 0 : index
    %c0_17 = arith.constant 0 : index
    %40 = vector.load %arg4[%c0_16, %c0_17] : memref<128x128xf32, #tpu.memory_space<vmem>>, vector<128x128xf32>
    %cst_18 = arith.constant dense<0.000000e+00> : vector<1x128xf32>
    %41 = tpu.matmul %39, %40, %cst_18 {dimension_numbers = #tpu.dot_dimension_numbers<[1], [0], [0], [1], [0, 0, 1, 1], [], []>} : vector<1x128xf32>, vector<128x128xf32>, vector<1x128xf32> -> vector<1x128xf32>
    %c0_19 = arith.constant 0 : index
    %c0_20 = arith.constant 0 : index
    %42 = vector.load %arg5[%c0_19, %c0_20] : memref<1x128xf32, #tpu.memory_space<vmem>>, vector<1x128xf32>
    %43 = arith.addf %41, %42 : vector<1x128xf32>
    %44 = tpu.iota {dimensions = array<i32: 1>} : vector<1x128xi32>
    %c5_i32 = arith.constant 5 : i32
    %45 = vector.broadcast %c5_i32 : i32 to vector<1x128xi32>
    %46 = arith.cmpi slt, %44, %45 : vector<1x128xi32>
    %cst_21 = arith.constant -1.000000e+30 : f32
    %47 = vector.broadcast %cst_21 : f32 to vector<1x128xf32>
    %48 = arith.select %46, %43, %47 : vector<1x128xi1>, vector<1x128xf32>
    %cst_22 = arith.constant dense<0xFF800000> : vector<1xf32>
    %49 = vector.multi_reduction <maximumf>, %48, %cst_22 [1] : vector<1x128xf32> to vector<1xf32>
    %50 = vector.shape_cast %49 : vector<1xf32> to vector<1x1xf32>
    %51 = vector.broadcast %50 : vector<1x1xf32> to vector<1x128xf32>
    %52 = arith.subf %48, %51 : vector<1x128xf32>
    %53 = math.exp %52 : vector<1x128xf32>
    %cst_23 = arith.constant 0.000000e+00 : f32
    %54 = vector.broadcast %cst_23 : f32 to vector<1x128xf32>
    %55 = arith.select %46, %53, %54 : vector<1x128xi1>, vector<1x128xf32>
    %cst_24 = arith.constant dense<0.000000e+00> : vector<1xf32>
    %56 = vector.multi_reduction <add>, %55, %cst_24 [1] : vector<1x128xf32> to vector<1xf32>
    %57 = vector.shape_cast %56 : vector<1xf32> to vector<1x1xf32>
    %58 = tpu.reciprocal %57 : vector<1x1xf32> -> vector<1x1xf32>
    %59 = vector.broadcast %58 : vector<1x1xf32> to vector<1x128xf32>
    %60 = arith.mulf %55, %59 : vector<1x128xf32>
    %c0_25 = arith.constant 0 : index
    %c0_26 = arith.constant 0 : index
    %61 = vector.load %arg6[%c0_25, %c0_26] : memref<1x128xf32, #tpu.memory_space<vmem>>, vector<1x128xf32>
    tpu.vector_store %arg6[%c0_25, %c0_26], %60 {strides = array<i32>} : memref<1x128xf32, #tpu.memory_space<vmem>>, vector<1x128xf32>,
    return
  }
}

</mosaic_0001>

<llo_original>
// kernel: _seqrnn_apply.1
$region0: #{_seqrnn_apply.1}
  #allocation0 [shape = 'u32[]', space=smem, size = 0x4, offset = 0x4, fixed_abs, tag = 'smem constant byte address 0x4 - core index']
  #allocation1 [shape = 'u32[144,128]{1,0:T(1,128)}', space=vmem, size = 0x12000, scoped, tag = 'internal scratch']
  %s0 = inlined_call_operand.vmem [shape: f32[8,128], index: 0, kind: input, shape index: {}]
  %s1 = inlined_call_operand.hbm [shape: f32[128,128], index: 1, kind: input, shape index: {}]
  %s2 = inlined_call_operand.hbm [shape: f32[128,128], index: 2, kind: input, shape index: {}]
  %s3 = inlined_call_operand.vmem [shape: f32[1,128], index: 3, kind: input, shape index: {}]
  %s4 = inlined_call_operand.hbm [shape: f32[128,128], index: 4, kind: input, shape index: {}]
  %s5 = inlined_call_operand.vmem [shape: f32[1,128], index: 5, kind: input, shape index: {}]
  %s6 = inlined_call_operand.hbm [shape: f32[1,128], index: 6, kind: output, shape index: {}]
  %s7 = sld [smem:[#allocation0]]
  $region46: #{_seqrnn_apply.1} parent=0
    _
  %s9 = ssub.s32 1, %s7
  %s10 = scalar_select 0, %s9, %s7
  $region1: #{_seqrnn_apply.1} parent=0
    #allocation2 [shape = 'u8[65536]{0}', space=vmem, size = 0x10000, scoped, tag = 'input window, operand 1, single buffered']
    #allocation3 [shape = 's32[1]{0}', space=sflag, size = 0x4, scoped, tag = 'scoped memory for _seqrnn_apply.1']
    #allocation4 [shape = 's32[1]{0}', space=sflag, size = 0x4, scoped, tag = 'scoped memory for _seqrnn_apply.1']
    #allocation5 [shape = 'u8[65536]{0}', space=vmem, size = 0x10000, scoped, tag = 'input window, operand 2, single buffered']
    #allocation6 [shape = 's32[1]{0}', space=sflag, size = 0x4, scoped, tag = 'scoped memory for _seqrnn_apply.1']
    #allocation7 [shape = 'u8[65536]{0}', space=vmem, size = 0x10000, scoped, tag = 'input window, operand 4, single buffered']
    #allocation8 [shape = 'u8[512]{0}', space=vmem, size = 0x400, scoped, tag = 'output window, operand 0, single buffered']
    %11 = vsyncpa [#allocation3], 0
    %12 = vsyncpa [#allocation6], 0
    %13 = vsyncpa [#allocation4], 0
    // Predicated region
    $region2: #{_seqrnn_apply.1} parent=1 // pred_check
      _
    $region3: #{_seqrnn_apply.1} parent=1 // pred_check_branch
      %15 = sbr.rel (0) target = $region5
    $region4: #{_seqrnn_apply.1} parent=1 // pred_region
      _
    $region5: #{_seqrnn_apply.1} parent=1 // pred_fallthru
      _
    // Predicated region
    $region6: #{_seqrnn_apply.1} parent=1 // pred_check
      _
    $region7: #{_seqrnn_apply.1} parent=1 // pred_check_branch
      %17 = sbr.rel (0) target = $region9
    $region8: #{_seqrnn_apply.1} parent=1 // pred_region
      %s19 = ssub.s32 2048, 2048
      %20 = vsyncadd [#allocation3], %s19
      %s21 = sshll.u32 [#allocation2], 4
      %s22 = int_to_ptr.vmem [resolvable:$true] %s21
      %27 = dma.hbm_to_vmem [thread:$0]  %s1, 2048, %s22, [#allocation3], 128, 128, 8
    $region9: #{_seqrnn_apply.1} parent=1 // pred_fallthru
      _
    // Predicated region
    $region10: #{_seqrnn_apply.1} parent=1 // pred_check
      _
    $region11: #{_seqrnn_apply.1} parent=1 // pred_check_branch
      %29 = sbr.rel (0) target = $region13
    $region12: #{_seqrnn_apply.1} parent=1 // pred_region
      %s31 = ssub.s32 2048, 2048
      %32 = vsyncadd [#allocation6], %s31
      %s33 = sshll.u32 [#allocation5], 4
      %s34 = int_to_ptr.vmem [resolvable:$true] %s33
      %39 = dma.hbm_to_vmem [thread:$0]  %s2, 2048, %s34, [#allocation6], 128, 128, 8
    $region13: #{_seqrnn_apply.1} parent=1 // pred_fallthru
      _
    // Predicated region
    $region14: #{_seqrnn_apply.1} parent=1 // pred_check
      _
    $region15: #{_seqrnn_apply.1} parent=1 // pred_check_branch
      %41 = sbr.rel (0) target = $region17
    $region16: #{_seqrnn_apply.1} parent=1 // pred_region
      _
    $region17: #{_seqrnn_apply.1} parent=1 // pred_fallthru
      _
    // Predicated region
    $region18: #{_seqrnn_apply.1} parent=1 // pred_check
      _
    $region19: #{_seqrnn_apply.1} parent=1 // pred_check_branch
      %43 = sbr.rel (0) target = $region21
    $region20: #{_seqrnn_apply.1} parent=1 // pred_region
      %s45 = ssub.s32 2048, 2048
      %46 = vsyncadd [#allocation6], %s45
      %s47 = sshll.u32 [#allocation7], 4
      %s48 = int_to_ptr.vmem [resolvable:$true] %s47
      %53 = dma.hbm_to_vmem [thread:$0]  %s4, 2048, %s48, [#allocation6], 128, 128, 8
    $region21: #{_seqrnn_apply.1} parent=1 // pred_fallthru
      _
    // Predicated region
    $region22: #{_seqrnn_apply.1} parent=1 // pred_check
      _
    $region23: #{_seqrnn_apply.1} parent=1 // pred_check_branch
      %55 = sbr.rel (0) target = $region25
    $region24: #{_seqrnn_apply.1} parent=1 // pred_region
      _
    $region25: #{_seqrnn_apply.1} parent=1 // pred_fallthru
      _
    // Predicated region
    $region26: #{_seqrnn_apply.1} parent=1 // pred_check
      _
    $region27: #{_seqrnn_apply.1} parent=1 // pred_check_branch
      %57 = sbr.rel (0) target = $region29
    $region28: #{_seqrnn_apply.1} parent=1 // pred_region
      %58 = dma.done [#allocation3], 2048
    $region29: #{_seqrnn_apply.1} parent=1 // pred_fallthru
      _
    // Predicated region
    $region30: #{_seqrnn_apply.1} parent=1 // pred_check
      _
    $region31: #{_seqrnn_apply.1} parent=1 // pred_check_branch
      %60 = sbr.rel (0) target = $region33
    $region32: #{_seqrnn_apply.1} parent=1 // pred_region
      %61 = dma.done [#allocation6], 2048
    $region33: #{_seqrnn_apply.1} parent=1 // pred_fallthru
      _
    // Predicated region
    $region34: #{_seqrnn_apply.1} parent=1 // pred_check
      _
    $region35: #{_seqrnn_apply.1} parent=1 // pred_check_branch
      %63 = sbr.rel (0) target = $region37
    $region36: #{_seqrnn_apply.1} parent=1 // pred_region
      %64 = dma.done [#allocation6], 2048
    $region37: #{_seqrnn_apply.1} parent=1 // pred_fallthru
      _
    %v65 = vld [vmem:[%s0] sm:$0xff]
    %v66 = vld [vmem:[#allocation2] sm:$0xff]
    %v67 = vld [vmem:[#allocation2 + $0x8] sm:$0xff]
    %v68 = vld [vmem:[#allocation2 + $0x10] sm:$0xff]
    %v69 = vld [vmem:[#allocation2 + $0x18] sm:$0xff]
    %v70 = vld [vmem:[#allocation2 + $0x20] sm:$0xff]
    %v71 = vld [vmem:[#allocation2 + $0x28] sm:$0xff]
    %v72 = vld [vmem:[#allocation2 + $0x30] sm:$0xff]
    %v73 = vld [vmem:[#allocation2 + $0x38] sm:$0xff]
    %v74 = vld [vmem:[#allocation2 + $0x40] sm:$0xff]
    %v75 = vld [vmem:[#allocation2 + $0x48] sm:$0xff]
    %v76 = vld [vmem:[#allocation2 + $0x50] sm:$0xff]
    %v77 = vld [vmem:[#allocation2 + $0x58] sm:$0xff]
    %v78 = vld [vmem:[#allocation2 + $0x60] sm:$0xff]
    %v79 = vld [vmem:[#allocation2 + $0x68] sm:$0xff]
    %v80 = vld [vmem:[#allocation2 + $0x70] sm:$0xff]
    %v81 = vld [vmem:[#allocation2 + $0x78] sm:$0xff]
    %v82 = vld [vmem:[%s3] sm:$0x1]
    %v84 = vlaneseq
    %v85 = vshrl.u32 %v84, 7
    %v86 = vsub.s32 0, %v85
    %v87 = vrot.slane %v82, %v86
    %89 = vmatprep.subr.mxu0 0.0
    %90 = vmatpush1.msra.mxu0 %v66
    %91 = vmatprep.subr.mxu0 0.0
    %92 = vmatpush1.msra.mxu0 %v67
    %93 = vmatprep.subr.mxu0 0.0
    %94 = vmatpush1.msra.mxu0 %v68
    %95 = vmatprep.subr.mxu0 0.0
    %96 = vmatpush1.msra.mxu0 %v69
    %97 = vmatprep.subr.mxu0 0.0
    %98 = vmatpush1.msra.mxu0 %v70
    %99 = vmatprep.subr.mxu0 0.0
    %100 = vmatpush1.msra.mxu0 %v71
    %101 = vmatprep.subr.mxu0 0.0
    %102 = vmatpush1.msra.mxu0 %v72
    %103 = vmatprep.subr.mxu0 0.0
    %104 = vmatpush1.msra.mxu0 %v73
    %105 = vmatprep.subr.mxu0 0.0
    %106 = vmatpush1.msra.mxu0 %v74
    %107 = vmatprep.subr.mxu0 0.0
    %108 = vmatpush1.msra.mxu0 %v75
    %109 = vmatprep.subr.mxu0 0.0
    %110 = vmatpush1.msra.mxu0 %v76
    %111 = vmatprep.subr.mxu0 0.0
    %112 = vmatpush1.msra.mxu0 %v77
    %113 = vmatprep.subr.mxu0 0.0
    %114 = vmatpush1.msra.mxu0 %v78
    %115 = vmatprep.subr.mxu0 0.0
    %116 = vmatpush1.msra.mxu0 %v79
    %117 = vmatprep.subr.mxu0 0.0
    %118 = vmatpush1.msra.mxu0 %v80
    %119 = vmatprep.subr.mxu0 0.0
    %120 = vmatpush1.msra.mxu0 %v81
    %121 = vmatprep.subr.mxu0 0.0
    %122 = vmatpush1.msra.mxu0 0.0
    %123 = vmatprep.subr.mxu0 0.0
    %124 = vmatpush1.msra.mxu0 0.0
    %125 = vmatprep.subr.mxu0 0.0
    %126 = vmatpush1.msra.mxu0 0.0
    %127 = vmatprep.subr.mxu0 0.0
    %128 = vmatpush1.msra.mxu0 0.0
    %129 = vmatprep.subr.mxu0 0.0
    %130 = vmatpush1.msra.mxu0 0.0
    %131 = vmatprep.subr.mxu0 0.0
    %132 = vmatpush1.msra.mxu0 0.0
    %133 = vmatprep.subr.mxu0 0.0
    %134 = vmatpush1.msra.mxu0 0.0
    %135 = vmatprep.subr.mxu0 0.0
    %136 = vmatpush1.msra.mxu0 0.0
    %137 = vmatprep.subr.mxu0 0.0
    %138 = vmatpush1.msra.mxu0 0.0
    %139 = vmatprep.subr.mxu0 0.0
    %140 = vmatpush1.msra.mxu0 0.0
    %141 = vmatprep.subr.mxu0 0.0
    %142 = vmatpush1.msra.mxu0 0.0
    %143 = vmatprep.subr.mxu0 0.0
    %144 = vmatpush1.msra.mxu0 0.0
    %145 = vmatprep.subr.mxu0 0.0
    %146 = vmatpush1.msra.mxu0 0.0
    %147 = vmatprep.subr.mxu0 0.0
    %148 = vmatpush1.msra.mxu0 0.0
    %149 = vmatprep.subr.mxu0 0.0
    %150 = vmatpush1.msra.mxu0 0.0
    %151 = vmatprep.subr.mxu0 0.0
    %152 = vmatpush1.msra.mxu0 0.0
    %153 = vmatprep.mubr.f32.mxu0 0.0
    %154 = vmatmul.mubr.f32.gmra.mrb[0].mxu0 %v65
    %v155 = vpop.f32.mrb[0].mxu0
    %v156 = vadd.f32 %v87, %v155
    %v157 = vpop.f32.mrb[0].mxu0
    %158 = vdwg.mxu0
    %v159 = vld [vmem:[#allocation5] sm:$0xff]
    %v160 = vld [vmem:[#allocation5 + $0x8] sm:$0xff]
    %v161 = vld [vmem:[#allocation5 + $0x10] sm:$0xff]
    %v162 = vld [vmem:[#allocation5 + $0x18] sm:$0xff]
    %v163 = vld [vmem:[#allocation5 + $0x20] sm:$0xff]
    %v164 = vld [vmem:[#allocation5 + $0x28] sm:$0xff]
    %v165 = vld [vmem:[#allocation5 + $0x30] sm:$0xff]
    %v166 = vld [vmem:[#allocation5 + $0x38] sm:$0xff]
    %v167 = vld [vmem:[#allocation5 + $0x40] sm:$0xff]
    %v168 = vld [vmem:[#allocation5 + $0x48] sm:$0xff]
    %v169 = vld [vmem:[#allocation5 + $0x50] sm:$0xff]
    %v170 = vld [vmem:[#allocation5 + $0x58] sm:$0xff]
    %v171 = vld [vmem:[#allocation5 + $0x60] sm:$0xff]
    %v172 = vld [vmem:[#allocation5 + $0x68] sm:$0xff]
    %v173 = vld [vmem:[#allocation5 + $0x70] sm:$0xff]
    %v174 = vld [vmem:[#allocation5 + $0x78] sm:$0xff]
    %175 = vmatprep.subr.mxu0 0.0
    %176 = vmatpush1.msra.mxu0 %v159
    %177 = vmatprep.subr.mxu0 0.0
    %178 = vmatpush1.msra.mxu0 %v160
    %179 = vmatprep.subr.mxu0 0.0
    %180 = vmatpush1.msra.mxu0 %v161
    %181 = vmatprep.subr.mxu0 0.0
    %182 = vmatpush1.msra.mxu0 %v162
    %183 = vmatprep.subr.mxu0 0.0
    %184 = vmatpush1.msra.mxu0 %v163
    %185 = vmatprep.subr.mxu0 0.0
    %186 = vmatpush1.msra.mxu0 %v164
    %187 = vmatprep.subr.mxu0 0.0
    %188 = vmatpush1.msra.mxu0 %v165
    %189 = vmatprep.subr.mxu0 0.0
    %190 = vmatpush1.msra.mxu0 %v166
    %191 = vmatprep.subr.mxu0 0.0
    %192 = vmatpush1.msra.mxu0 %v167
    %193 = vmatprep.subr.mxu0 0.0
    %194 = vmatpush1.msra.mxu0 %v168
    %195 = vmatprep.subr.mxu0 0.0
    %196 = vmatpush1.msra.mxu0 %v169
    %197 = vmatprep.subr.mxu0 0.0
    %198 = vmatpush1.msra.mxu0 %v170
    %199 = vmatprep.subr.mxu0 0.0
    %200 = vmatpush1.msra.mxu0 %v171
    %201 = vmatprep.subr.mxu0 0.0
    %202 = vmatpush1.msra.mxu0 %v172
    %203 = vmatprep.subr.mxu0 0.0
    %204 = vmatpush1.msra.mxu0 %v173
    %205 = vmatprep.subr.mxu0 0.0
    %206 = vmatpush1.msra.mxu0 %v174
    %207 = vmatprep.subr.mxu0 0.0
    %208 = vmatpush1.msra.mxu0 0.0
    %209 = vmatprep.subr.mxu0 0.0
    %210 = vmatpush1.msra.mxu0 0.0
    %211 = vmatprep.subr.mxu0 0.0
    %212 = vmatpush1.msra.mxu0 0.0
    %213 = vmatprep.subr.mxu0 0.0
    %214 = vmatpush1.msra.mxu0 0.0
    %215 = vmatprep.subr.mxu0 0.0
    %216 = vmatpush1.msra.mxu0 0.0
    %217 = vmatprep.subr.mxu0 0.0
    %218 = vmatpush1.msra.mxu0 0.0
    %219 = vmatprep.subr.mxu0 0.0
    %220 = vmatpush1.msra.mxu0 0.0
    %221 = vmatprep.subr.mxu0 0.0
    %222 = vmatpush1.msra.mxu0 0.0
    %223 = vmatprep.subr.mxu0 0.0
    %224 = vmatpush1.msra.mxu0 0.0
    %225 = vmatprep.subr.mxu0 0.0
    %226 = vmatpush1.msra.mxu0 0.0
    %227 = vmatprep.subr.mxu0 0.0
    %228 = vmatpush1.msra.mxu0 0.0
    %229 = vmatprep.subr.mxu0 0.0
    %230 = vmatpush1.msra.mxu0 0.0
    %231 = vmatprep.subr.mxu0 0.0
    %232 = vmatpush1.msra.mxu0 0.0
    %233 = vmatprep.subr.mxu0 0.0
    %234 = vmatpush1.msra.mxu0 0.0
    %235 = vmatprep.subr.mxu0 0.0
    %236 = vmatpush1.msra.mxu0 0.0
    %237 = vmatprep.subr.mxu0 0.0
    %238 = vmatpush1.msra.mxu0 0.0
    %239 = vmatprep.mubr.f32.mxu0 0.0
    %240 = vmatmul.mubr.f32.gmra.mrb[0].mxu0 0.0
    %v241 = vpop.f32.mrb[0].mxu0
    %v242 = vadd.f32 0.0, %v241
    %v243 = vpop.f32.mrb[0].mxu0
    %244 = vdwg.mxu0
    %v245 = vadd.f32 %v156, %v242
    %v246 = vtanh.pop %v245
    %247 = vmatprep.subr.mxu0 0.0
    %248 = vmatpush1.msra.mxu0 %v159
    %249 = vmatprep.subr.mxu0 0.0
    %250 = vmatpush1.msra.mxu0 %v160
    %251 = vmatprep.subr.mxu0 0.0
    %252 = vmatpush1.msra.mxu0 %v161
    %253 = vmatprep.subr.mxu0 0.0
    %254 = vmatpush1.msra.mxu0 %v162
    %255 = vmatprep.subr.mxu0 0.0
    %256 = vmatpush1.msra.mxu0 %v163
    %257 = vmatprep.subr.mxu0 0.0
    %258 = vmatpush1.msra.mxu0 %v164
    %259 = vmatprep.subr.mxu0 0.0
    %260 = vmatpush1.msra.mxu0 %v165
    %261 = vmatprep.subr.mxu0 0.0
    %262 = vmatpush1.msra.mxu0 %v166
    %263 = vmatprep.subr.mxu0 0.0
    %264 = vmatpush1.msra.mxu0 %v167
    %265 = vmatprep.subr.mxu0 0.0
    %266 = vmatpush1.msra.mxu0 %v168
    %267 = vmatprep.subr.mxu0 0.0
    %268 = vmatpush1.msra.mxu0 %v169
    %269 = vmatprep.subr.mxu0 0.0
    %270 = vmatpush1.msra.mxu0 %v170
    %271 = vmatprep.subr.mxu0 0.0
    %272 = vmatpush1.msra.mxu0 %v171
    %273 = vmatprep.subr.mxu0 0.0
    %274 = vmatpush1.msra.mxu0 %v172
    %275 = vmatprep.subr.mxu0 0.0
    %276 = vmatpush1.msra.mxu0 %v173
    %277 = vmatprep.subr.mxu0 0.0
    %278 = vmatpush1.msra.mxu0 %v174
    %279 = vmatprep.subr.mxu0 0.0
    %280 = vmatpush1.msra.mxu0 0.0
    %281 = vmatprep.subr.mxu0 0.0
    %282 = vmatpush1.msra.mxu0 0.0
    %283 = vmatprep.subr.mxu0 0.0
    %284 = vmatpush1.msra.mxu0 0.0
    %285 = vmatprep.subr.mxu0 0.0
    %286 = vmatpush1.msra.mxu0 0.0
    %287 = vmatprep.subr.mxu0 0.0
    %288 = vmatpush1.msra.mxu0 0.0
    %289 = vmatprep.subr.mxu0 0.0
    %290 = vmatpush1.msra.mxu0 0.0
    %291 = vmatprep.subr.mxu0 0.0
    %292 = vmatpush1.msra.mxu0 0.0
    %293 = vmatprep.subr.mxu0 0.0
    %294 = vmatpush1.msra.mxu0 0.0
    %295 = vmatprep.subr.mxu0 0.0
    %296 = vmatpush1.msra.mxu0 0.0
    %297 = vmatprep.subr.mxu0 0.0
    %298 = vmatpush1.msra.mxu0 0.0
    %299 = vmatprep.subr.mxu0 0.0
    %300 = vmatpush1.msra.mxu0 0.0
    %301 = vmatprep.subr.mxu0 0.0
    %302 = vmatpush1.msra.mxu0 0.0
    %303 = vmatprep.subr.mxu0 0.0
    %304 = vmatpush1.msra.mxu0 0.0
    %305 = vmatprep.subr.mxu0 0.0
    %306 = vmatpush1.msra.mxu0 0.0
    %307 = vmatprep.subr.mxu0 0.0
    %308 = vmatpush1.msra.mxu0 0.0
    %309 = vmatprep.subr.mxu0 0.0
    %310 = vmatpush1.msra.mxu0 0.0
    %311 = vmatprep.mubr.f32.mxu0 0.0
    %312 = vmatmul.mubr.f32.gmra.mrb[0].mxu0 %v246
    %v313 = vpop.f32.mrb[0].mxu0
    %v314 = vadd.f32 0.0, %v313
    %v315 = vpop.f32.mrb[0].mxu0
    %316 = vdwg.mxu0
    %v318 = vrot.slane %v314, 7
    %v320 = vadd.f32 %v156, %v318
    %v321 = vtanh.pop %v320
    %v323 = vrot.slane %v321, 1
    %325 = vmatprep.subr.mxu0 0.0
    %326 = vmatpush1.msra.mxu0 %v159
    %327 = vmatprep.subr.mxu0 0.0
    %328 = vmatpush1.msra.mxu0 %v160
    %329 = vmatprep.subr.mxu0 0.0
    %330 = vmatpush1.msra.mxu0 %v161
    %331 = vmatprep.subr.mxu0 0.0
    %332 = vmatpush1.msra.mxu0 %v162
    %333 = vmatprep.subr.mxu0 0.0
    %334 = vmatpush1.msra.mxu0 %v163
    %335 = vmatprep.subr.mxu0 0.0
    %336 = vmatpush1.msra.mxu0 %v164
    %337 = vmatprep.subr.mxu0 0.0
    %338 = vmatpush1.msra.mxu0 %v165
    %339 = vmatprep.subr.mxu0 0.0
    %340 = vmatpush1.msra.mxu0 %v166
    %341 = vmatprep.subr.mxu0 0.0
    %342 = vmatpush1.msra.mxu0 %v167
    %343 = vmatprep.subr.mxu0 0.0
    %344 = vmatpush1.msra.mxu0 %v168
    %345 = vmatprep.subr.mxu0 0.0
    %346 = vmatpush1.msra.mxu0 %v169
    %347 = vmatprep.subr.mxu0 0.0
    %348 = vmatpush1.msra.mxu0 %v170
    %349 = vmatprep.subr.mxu0 0.0
    %350 = vmatpush1.msra.mxu0 %v171
    %351 = vmatprep.subr.mxu0 0.0
    %352 = vmatpush1.msra.mxu0 %v172
    %353 = vmatprep.subr.mxu0 0.0
    %354 = vmatpush1.msra.mxu0 %v173
    %355 = vmatprep.subr.mxu0 0.0
    %356 = vmatpush1.msra.mxu0 %v174
    %357 = vmatprep.subr.mxu0 0.0
    %358 = vmatpush1.msra.mxu0 0.0
    %359 = vmatprep.subr.mxu0 0.0
    %360 = vmatpush1.msra.mxu0 0.0
    %361 = vmatprep.subr.mxu0 0.0
    %362 = vmatpush1.msra.mxu0 0.0
    %363 = vmatprep.subr.mxu0 0.0
    %364 = vmatpush1.msra.mxu0 0.0
    %365 = vmatprep.subr.mxu0 0.0
    %366 = vmatpush1.msra.mxu0 0.0
    %367 = vmatprep.subr.mxu0 0.0
    %368 = vmatpush1.msra.mxu0 0.0
    %369 = vmatprep.subr.mxu0 0.0
    %370 = vmatpush1.msra.mxu0 0.0
    %371 = vmatprep.subr.mxu0 0.0
    %372 = vmatpush1.msra.mxu0 0.0
    %373 = vmatprep.subr.mxu0 0.0
    %374 = vmatpush1.msra.mxu0 0.0
    %375 = vmatprep.subr.mxu0 0.0
    %376 = vmatpush1.msra.mxu0 0.0
    %377 = vmatprep.subr.mxu0 0.0
    %378 = vmatpush1.msra.mxu0 0.0
    %379 = vmatprep.subr.mxu0 0.0
    %380 = vmatpush1.msra.mxu0 0.0
    %381 = vmatprep.subr.mxu0 0.0
    %382 = vmatpush1.msra.mxu0 0.0
    %383 = vmatprep.subr.mxu0 0.0
    %384 = vmatpush1.msra.mxu0 0.0
    %385 = vmatprep.subr.mxu0 0.0
    %386 = vmatpush1.msra.mxu0 0.0
    %387 = vmatprep.subr.mxu0 0.0
    %388 = vmatpush1.msra.mxu0 0.0
    %389 = vmatprep.mubr.f32.mxu0 0.0
    %390 = vmatmul.mubr.f32.gmra.mrb[0].mxu0 %v323
    %v391 = vpop.f32.mrb[0].mxu0
    %v392 = vadd.f32 0.0, %v391
    %v393 = vpop.f32.mrb[0].mxu0
    %394 = vdwg.mxu0
    %v396 = vrot.slane %v392, 6
    %v398 = vadd.f32 %v156, %v396
    %v399 = vtanh.pop %v398
    %v401 = vrot.slane %v399, 2
    %403 = vmatprep.subr.mxu0 0.0
    %404 = vmatpush1.msra.mxu0 %v159
    %405 = vmatprep.subr.mxu0 0.0
    %406 = vmatpush1.msra.mxu0 %v160
    %407 = vmatprep.subr.mxu0 0.0
    %408 = vmatpush1.msra.mxu0 %v161
    %409 = vmatprep.subr.mxu0 0.0
    %410 = vmatpush1.msra.mxu0 %v162
    %411 = vmatprep.subr.mxu0 0.0
    %412 = vmatpush1.msra.mxu0 %v163
    %413 = vmatprep.subr.mxu0 0.0
    %414 = vmatpush1.msra.mxu0 %v164
    %415 = vmatprep.subr.mxu0 0.0
    %416 = vmatpush1.msra.mxu0 %v165
    %417 = vmatprep.subr.mxu0 0.0
    %418 = vmatpush1.msra.mxu0 %v166
    %419 = vmatprep.subr.mxu0 0.0
    %420 = vmatpush1.msra.mxu0 %v167
    %421 = vmatprep.subr.mxu0 0.0
    %422 = vmatpush1.msra.mxu0 %v168
    %423 = vmatprep.subr.mxu0 0.0
    %424 = vmatpush1.msra.mxu0 %v169
    %425 = vmatprep.subr.mxu0 0.0
    %426 = vmatpush1.msra.mxu0 %v170
    %427 = vmatprep.subr.mxu0 0.0
    %428 = vmatpush1.msra.mxu0 %v171
    %429 = vmatprep.subr.mxu0 0.0
    %430 = vmatpush1.msra.mxu0 %v172
    %431 = vmatprep.subr.mxu0 0.0
    %432 = vmatpush1.msra.mxu0 %v173
    %433 = vmatprep.subr.mxu0 0.0
    %434 = vmatpush1.msra.mxu0 %v174
    %435 = vmatprep.subr.mxu0 0.0
    %436 = vmatpush1.msra.mxu0 0.0
    %437 = vmatprep.subr.mxu0 0.0
    %438 = vmatpush1.msra.mxu0 0.0
    %439 = vmatprep.subr.mxu0 0.0
    %440 = vmatpush1.msra.mxu0 0.0
    %441 = vmatprep.subr.mxu0 0.0
    %442 = vmatpush1.msra.mxu0 0.0
    %443 = vmatprep.subr.mxu0 0.0
    %444 = vmatpush1.msra.mxu0 0.0
    %445 = vmatprep.subr.mxu0 0.0
    %446 = vmatpush1.msra.mxu0 0.0
    %447 = vmatprep.subr.mxu0 0.0
    %448 = vmatpush1.msra.mxu0 0.0
    %449 = vmatprep.subr.mxu0 0.0
    %450 = vmatpush1.msra.mxu0 0.0
    %451 = vmatprep.subr.mxu0 0.0
    %452 = vmatpush1.msra.mxu0 0.0
    %453 = vmatprep.subr.mxu0 0.0
    %454 = vmatpush1.msra.mxu0 0.0
    %455 = vmatprep.subr.mxu0 0.0
    %456 = vmatpush1.msra.mxu0 0.0
    %457 = vmatprep.subr.mxu0 0.0
    %458 = vmatpush1.msra.mxu0 0.0
    %459 = vmatprep.subr.mxu0 0.0
    %460 = vmatpush1.msra.mxu0 0.0
    %461 = vmatprep.subr.mxu0 0.0
    %462 = vmatpush1.msra.mxu0 0.0
    %463 = vmatprep.subr.mxu0 0.0
    %464 = vmatpush1.msra.mxu0 0.0
    %465 = vmatprep.subr.mxu0 0.0
    %466 = vmatpush1.msra.mxu0 0.0
    %467 = vmatprep.mubr.f32.mxu0 0.0
    %468 = vmatmul.mubr.f32.gmra.mrb[0].mxu0 %v401
    %v469 = vpop.f32.mrb[0].mxu0
    %v470 = vadd.f32 0.0, %v469
    %v471 = vpop.f32.mrb[0].mxu0
    %472 = vdwg.mxu0
    %v474 = vrot.slane %v470, 5
    %v476 = vadd.f32 %v156, %v474
    %v477 = vtanh.pop %v476
    %v479 = vrot.slane %v477, 3
    %481 = vmatprep.subr.mxu0 0.0
    %482 = vmatpush1.msra.mxu0 %v159
    %483 = vmatprep.subr.mxu0 0.0
    %484 = vmatpush1.msra.mxu0 %v160
    %485 = vmatprep.subr.mxu0 0.0
    %486 = vmatpush1.msra.mxu0 %v161
    %487 = vmatprep.subr.mxu0 0.0
    %488 = vmatpush1.msra.mxu0 %v162
    %489 = vmatprep.subr.mxu0 0.0
    %490 = vmatpush1.msra.mxu0 %v163
    %491 = vmatprep.subr.mxu0 0.0
    %492 = vmatpush1.msra.mxu0 %v164
    %493 = vmatprep.subr.mxu0 0.0
    %494 = vmatpush1.msra.mxu0 %v165
    %495 = vmatprep.subr.mxu0 0.0
    %496 = vmatpush1.msra.mxu0 %v166
    %497 = vmatprep.subr.mxu0 0.0
    %498 = vmatpush1.msra.mxu0 %v167
    %499 = vmatprep.subr.mxu0 0.0
    %500 = vmatpush1.msra.mxu0 %v168
    %501 = vmatprep.subr.mxu0 0.0
    %502 = vmatpush1.msra.mxu0 %v169
    %503 = vmatprep.subr.mxu0 0.0
    %504 = vmatpush1.msra.mxu0 %v170
    %505 = vmatprep.subr.mxu0 0.0
    %506 = vmatpush1.msra.mxu0 %v171
    %507 = vmatprep.subr.mxu0 0.0
    %508 = vmatpush1.msra.mxu0 %v172
    %509 = vmatprep.subr.mxu0 0.0
    %510 = vmatpush1.msra.mxu0 %v173
    %511 = vmatprep.subr.mxu0 0.0
    %512 = vmatpush1.msra.mxu0 %v174
    %513 = vmatprep.subr.mxu0 0.0
    %514 = vmatpush1.msra.mxu0 0.0
    %515 = vmatprep.subr.mxu0 0.0
    %516 = vmatpush1.msra.mxu0 0.0
    %517 = vmatprep.subr.mxu0 0.0
    %518 = vmatpush1.msra.mxu0 0.0
    %519 = vmatprep.subr.mxu0 0.0
    %520 = vmatpush1.msra.mxu0 0.0
    %521 = vmatprep.subr.mxu0 0.0
    %522 = vmatpush1.msra.mxu0 0.0
    %523 = vmatprep.subr.mxu0 0.0
    %524 = vmatpush1.msra.mxu0 0.0
    %525 = vmatprep.subr.mxu0 0.0
    %526 = vmatpush1.msra.mxu0 0.0
    %527 = vmatprep.subr.mxu0 0.0
    %528 = vmatpush1.msra.mxu0 0.0
    %529 = vmatprep.subr.mxu0 0.0
    %530 = vmatpush1.msra.mxu0 0.0
    %531 = vmatprep.subr.mxu0 0.0
    %532 = vmatpush1.msra.mxu0 0.0
    %533 = vmatprep.subr.mxu0 0.0
    %534 = vmatpush1.msra.mxu0 0.0
    %535 = vmatprep.subr.mxu0 0.0
    %536 = vmatpush1.msra.mxu0 0.0
    %537 = vmatprep.subr.mxu0 0.0
    %538 = vmatpush1.msra.mxu0 0.0
    %539 = vmatprep.subr.mxu0 0.0
    %540 = vmatpush1.msra.mxu0 0.0
    %541 = vmatprep.subr.mxu0 0.0
    %542 = vmatpush1.msra.mxu0 0.0
    %543 = vmatprep.subr.mxu0 0.0
    %544 = vmatpush1.msra.mxu0 0.0
    %545 = vmatprep.mubr.f32.mxu0 0.0
    %546 = vmatmul.mubr.f32.gmra.mrb[0].mxu0 %v479
    %v547 = vpop.f32.mrb[0].mxu0
    %v548 = vadd.f32 0.0, %v547
    %v549 = vpop.f32.mrb[0].mxu0
    %550 = vdwg.mxu0
    %v552 = vrot.slane %v548, 4
    %v554 = vadd.f32 %v156, %v552
    %v555 = vtanh.pop %v554
    %v557 = vrot.slane %v555, 4
    %559 = vmatprep.subr.mxu0 0.0
    %560 = vmatpush1.msra.mxu0 %v159
    %561 = vmatprep.subr.mxu0 0.0
    %562 = vmatpush1.msra.mxu0 %v160
    %563 = vmatprep.subr.mxu0 0.0
    %564 = vmatpush1.msra.mxu0 %v161
    %565 = vmatprep.subr.mxu0 0.0
    %566 = vmatpush1.msra.mxu0 %v162
    %567 = vmatprep.subr.mxu0 0.0
    %568 = vmatpush1.msra.mxu0 %v163
    %569 = vmatprep.subr.mxu0 0.0
    %570 = vmatpush1.msra.mxu0 %v164
    %571 = vmatprep.subr.mxu0 0.0
    %572 = vmatpush1.msra.mxu0 %v165
    %573 = vmatprep.subr.mxu0 0.0
    %574 = vmatpush1.msra.mxu0 %v166
    %575 = vmatprep.subr.mxu0 0.0
    %576 = vmatpush1.msra.mxu0 %v167
    %577 = vmatprep.subr.mxu0 0.0
    %578 = vmatpush1.msra.mxu0 %v168
    %579 = vmatprep.subr.mxu0 0.0
    %580 = vmatpush1.msra.mxu0 %v169
    %581 = vmatprep.subr.mxu0 0.0
    %582 = vmatpush1.msra.mxu0 %v170
    %583 = vmatprep.subr.mxu0 0.0
    %584 = vmatpush1.msra.mxu0 %v171
    %585 = vmatprep.subr.mxu0 0.0
    %586 = vmatpush1.msra.mxu0 %v172
    %587 = vmatprep.subr.mxu0 0.0
    %588 = vmatpush1.msra.mxu0 %v173
    %589 = vmatprep.subr.mxu0 0.0
    %590 = vmatpush1.msra.mxu0 %v174
    %591 = vmatprep.subr.mxu0 0.0
    %592 = vmatpush1.msra.mxu0 0.0
    %593 = vmatprep.subr.mxu0 0.0
    %594 = vmatpush1.msra.mxu0 0.0
    %595 = vmatprep.subr.mxu0 0.0
    %596 = vmatpush1.msra.mxu0 0.0
    %597 = vmatprep.subr.mxu0 0.0
    %598 = vmatpush1.msra.mxu0 0.0
    %599 = vmatprep.subr.mxu0 0.0
    %600 = vmatpush1.msra.mxu0 0.0
    %601 = vmatprep.subr.mxu0 0.0
    %602 = vmatpush1.msra.mxu0 0.0
    %603 = vmatprep.subr.mxu0 0.0
    %604 = vmatpush1.msra.mxu0 0.0
    %605 = vmatprep.subr.mxu0 0.0
    %606 = vmatpush1.msra.mxu0 0.0
    %607 = vmatprep.subr.mxu0 0.0
    %608 = vmatpush1.msra.mxu0 0.0
    %609 = vmatprep.subr.mxu0 0.0
    %610 = vmatpush1.msra.mxu0 0.0
    %611 = vmatprep.subr.mxu0 0.0
    %612 = vmatpush1.msra.mxu0 0.0
    %613 = vmatprep.subr.mxu0 0.0
    %614 = vmatpush1.msra.mxu0 0.0
    %615 = vmatprep.subr.mxu0 0.0
    %616 = vmatpush1.msra.mxu0 0.0
    %617 = vmatprep.subr.mxu0 0.0
    %618 = vmatpush1.msra.mxu0 0.0
    %619 = vmatprep.subr.mxu0 0.0
    %620 = vmatpush1.msra.mxu0 0.0
    %621 = vmatprep.subr.mxu0 0.0
    %622 = vmatpush1.msra.mxu0 0.0
    %623 = vmatprep.mubr.f32.mxu0 0.0
    %624 = vmatmul.mubr.f32.gmra.mrb[0].mxu0 %v557
    %v625 = vpop.f32.mrb[0].mxu0
    %v626 = vadd.f32 0.0, %v625
    %v627 = vpop.f32.mrb[0].mxu0
    %628 = vdwg.mxu0
    %v630 = vrot.slane %v626, 3
    %v632 = vadd.f32 %v156, %v630
    %v633 = vtanh.pop %v632
    %v635 = vrot.slane %v633, 5
    %637 = vmatprep.subr.mxu0 0.0
    %638 = vmatpush1.msra.mxu0 %v159
    %639 = vmatprep.subr.mxu0 0.0
    %640 = vmatpush1.msra.mxu0 %v160
    %641 = vmatprep.subr.mxu0 0.0
    %642 = vmatpush1.msra.mxu0 %v161
    %643 = vmatprep.subr.mxu0 0.0
    %644 = vmatpush1.msra.mxu0 %v162
    %645 = vmatprep.subr.mxu0 0.0
    %646 = vmatpush1.msra.mxu0 %v163
    %647 = vmatprep.subr.mxu0 0.0
    %648 = vmatpush1.msra.mxu0 %v164
    %649 = vmatprep.subr.mxu0 0.0
    %650 = vmatpush1.msra.mxu0 %v165
    %651 = vmatprep.subr.mxu0 0.0
    %652 = vmatpush1.msra.mxu0 %v166
    %653 = vmatprep.subr.mxu0 0.0
    %654 = vmatpush1.msra.mxu0 %v167
    %655 = vmatprep.subr.mxu0 0.0
    %656 = vmatpush1.msra.mxu0 %v168
    %657 = vmatprep.subr.mxu0 0.0
    %658 = vmatpush1.msra.mxu0 %v169
    %659 = vmatprep.subr.mxu0 0.0
    %660 = vmatpush1.msra.mxu0 %v170
    %661 = vmatprep.subr.mxu0 0.0
    %662 = vmatpush1.msra.mxu0 %v171
    %663 = vmatprep.subr.mxu0 0.0
    %664 = vmatpush1.msra.mxu0 %v172
    %665 = vmatprep.subr.mxu0 0.0
    %666 = vmatpush1.msra.mxu0 %v173
    %667 = vmatprep.subr.mxu0 0.0
    %668 = vmatpush1.msra.mxu0 %v174
    %669 = vmatprep.subr.mxu0 0.0
    %670 = vmatpush1.msra.mxu0 0.0
    %671 = vmatprep.subr.mxu0 0.0
    %672 = vmatpush1.msra.mxu0 0.0
    %673 = vmatprep.subr.mxu0 0.0
    %674 = vmatpush1.msra.mxu0 0.0
    %675 = vmatprep.subr.mxu0 0.0
    %676 = vmatpush1.msra.mxu0 0.0
    %677 = vmatprep.subr.mxu0 0.0
    %678 = vmatpush1.msra.mxu0 0.0
    %679 = vmatprep.subr.mxu0 0.0
    %680 = vmatpush1.msra.mxu0 0.0
    %681 = vmatprep.subr.mxu0 0.0
    %682 = vmatpush1.msra.mxu0 0.0
    %683 = vmatprep.subr.mxu0 0.0
    %684 = vmatpush1.msra.mxu0 0.0
    %685 = vmatprep.subr.mxu0 0.0
    %686 = vmatpush1.msra.mxu0 0.0
    %687 = vmatprep.subr.mxu0 0.0
    %688 = vmatpush1.msra.mxu0 0.0
    %689 = vmatprep.subr.mxu0 0.0
    %690 = vmatpush1.msra.mxu0 0.0
    %691 = vmatprep.subr.mxu0 0.0
    %692 = vmatpush1.msra.mxu0 0.0
    %693 = vmatprep.subr.mxu0 0.0
    %694 = vmatpush1.msra.mxu0 0.0
    %695 = vmatprep.subr.mxu0 0.0
    %696 = vmatpush1.msra.mxu0 0.0
    %697 = vmatprep.subr.mxu0 0.0
    %698 = vmatpush1.msra.mxu0 0.0
    %699 = vmatprep.subr.mxu0 0.0
    %700 = vmatpush1.msra.mxu0 0.0
    %701 = vmatprep.mubr.f32.mxu0 0.0
    %702 = vmatmul.mubr.f32.gmra.mrb[0].mxu0 %v635
    %v703 = vpop.f32.mrb[0].mxu0
    %v704 = vadd.f32 0.0, %v703
    %v705 = vpop.f32.mrb[0].mxu0
    %706 = vdwg.mxu0
    %v708 = vrot.slane %v704, 2
    %v710 = vadd.f32 %v156, %v708
    %v711 = vtanh.pop %v710
    %v713 = vrot.slane %v711, 6
    %715 = vmatprep.subr.mxu0 0.0
    %716 = vmatpush1.msra.mxu0 %v159
    %717 = vmatprep.subr.mxu0 0.0
    %718 = vmatpush1.msra.mxu0 %v160
    %719 = vmatprep.subr.mxu0 0.0
    %720 = vmatpush1.msra.mxu0 %v161
    %721 = vmatprep.subr.mxu0 0.0
    %722 = vmatpush1.msra.mxu0 %v162
    %723 = vmatprep.subr.mxu0 0.0
    %724 = vmatpush1.msra.mxu0 %v163
    %725 = vmatprep.subr.mxu0 0.0
    %726 = vmatpush1.msra.mxu0 %v164
    %727 = vmatprep.subr.mxu0 0.0
    %728 = vmatpush1.msra.mxu0 %v165
    %729 = vmatprep.subr.mxu0 0.0
    %730 = vmatpush1.msra.mxu0 %v166
    %731 = vmatprep.subr.mxu0 0.0
    %732 = vmatpush1.msra.mxu0 %v167
    %733 = vmatprep.subr.mxu0 0.0
    %734 = vmatpush1.msra.mxu0 %v168
    %735 = vmatprep.subr.mxu0 0.0
    %736 = vmatpush1.msra.mxu0 %v169
    %737 = vmatprep.subr.mxu0 0.0
    %738 = vmatpush1.msra.mxu0 %v170
    %739 = vmatprep.subr.mxu0 0.0
    %740 = vmatpush1.msra.mxu0 %v171
    %741 = vmatprep.subr.mxu0 0.0
    %742 = vmatpush1.msra.mxu0 %v172
    %743 = vmatprep.subr.mxu0 0.0
    %744 = vmatpush1.msra.mxu0 %v173
    %745 = vmatprep.subr.mxu0 0.0
    %746 = vmatpush1.msra.mxu0 %v174
    %747 = vmatprep.subr.mxu0 0.0
    %748 = vmatpush1.msra.mxu0 0.0
    %749 = vmatprep.subr.mxu0 0.0
    %750 = vmatpush1.msra.mxu0 0.0
    %751 = vmatprep.subr.mxu0 0.0
    %752 = vmatpush1.msra.mxu0 0.0
    %753 = vmatprep.subr.mxu0 0.0
    %754 = vmatpush1.msra.mxu0 0.0
    %755 = vmatprep.subr.mxu0 0.0
    %756 = vmatpush1.msra.mxu0 0.0
    %757 = vmatprep.subr.mxu0 0.0
    %758 = vmatpush1.msra.mxu0 0.0
    %759 = vmatprep.subr.mxu0 0.0
    %760 = vmatpush1.msra.mxu0 0.0
    %761 = vmatprep.subr.mxu0 0.0
    %762 = vmatpush1.msra.mxu0 0.0
    %763 = vmatprep.subr.mxu0 0.0
    %764 = vmatpush1.msra.mxu0 0.0
    %765 = vmatprep.subr.mxu0 0.0
    %766 = vmatpush1.msra.mxu0 0.0
    %767 = vmatprep.subr.mxu0 0.0
    %768 = vmatpush1.msra.mxu0 0.0
    %769 = vmatprep.subr.mxu0 0.0
    %770 = vmatpush1.msra.mxu0 0.0
    %771 = vmatprep.subr.mxu0 0.0
    %772 = vmatpush1.msra.mxu0 0.0
    %773 = vmatprep.subr.mxu0 0.0
    %774 = vmatpush1.msra.mxu0 0.0
    %775 = vmatprep.subr.mxu0 0.0
    %776 = vmatpush1.msra.mxu0 0.0
    %777 = vmatprep.subr.mxu0 0.0
    %778 = vmatpush1.msra.mxu0 0.0
    %779 = vmatprep.mubr.f32.mxu0 0.0
    %780 = vmatmul.mubr.f32.gmra.mrb[0].mxu0 %v713
    %v781 = vpop.f32.mrb[0].mxu0
    %v782 = vadd.f32 0.0, %v781
    %v783 = vpop.f32.mrb[0].mxu0
    %784 = vdwg.mxu0
    %v786 = vrot.slane %v782, 1
    %v788 = vadd.f32 %v156, %v786
    %v789 = vtanh.pop %v788
    %v790 = vld [vmem:[#allocation7] sm:$0xff]
    %v791 = vld [vmem:[#allocation7 + $0x8] sm:$0xff]
    %v792 = vld [vmem:[#allocation7 + $0x10] sm:$0xff]
    %v793 = vld [vmem:[#allocation7 + $0x18] sm:$0xff]
    %v794 = vld [vmem:[#allocation7 + $0x20] sm:$0xff]
    %v795 = vld [vmem:[#allocation7 + $0x28] sm:$0xff]
    %v796 = vld [vmem:[#allocation7 + $0x30] sm:$0xff]
    %v797 = vld [vmem:[#allocation7 + $0x38] sm:$0xff]
    %v798 = vld [vmem:[#allocation7 + $0x40] sm:$0xff]
    %v799 = vld [vmem:[#allocation7 + $0x48] sm:$0xff]
    %v800 = vld [vmem:[#allocation7 + $0x50] sm:$0xff]
    %v801 = vld [vmem:[#allocation7 + $0x58] sm:$0xff]
    %v802 = vld [vmem:[#allocation7 + $0x60] sm:$0xff]
    %v803 = vld [vmem:[#allocation7 + $0x68] sm:$0xff]
    %v804 = vld [vmem:[#allocation7 + $0x70] sm:$0xff]
    %v805 = vld [vmem:[#allocation7 + $0x78] sm:$0xff]
    %v806 = vld [vmem:[%s5] sm:$0x1]
    %v808 = vrot.slane %v789, 7
    %810 = vmatprep.subr.mxu0 0.0
    %811 = vmatpush1.msra.mxu0 %v790
    %812 = vmatprep.subr.mxu0 0.0
    %813 = vmatpush1.msra.mxu0 %v791
    %814 = vmatprep.subr.mxu0 0.0
    %815 = vmatpush1.msra.mxu0 %v792
    %816 = vmatprep.subr.mxu0 0.0
    %817 = vmatpush1.msra.mxu0 %v793
    %818 = vmatprep.subr.mxu0 0.0
    %819 = vmatpush1.msra.mxu0 %v794
    %820 = vmatprep.subr.mxu0 0.0
    %821 = vmatpush1.msra.mxu0 %v795
    %822 = vmatprep.subr.mxu0 0.0
    %823 = vmatpush1.msra.mxu0 %v796
    %824 = vmatprep.subr.mxu0 0.0
    %825 = vmatpush1.msra.mxu0 %v797
    %826 = vmatprep.subr.mxu0 0.0
    %827 = vmatpush1.msra.mxu0 %v798
    %828 = vmatprep.subr.mxu0 0.0
    %829 = vmatpush1.msra.mxu0 %v799
    %830 = vmatprep.subr.mxu0 0.0
    %831 = vmatpush1.msra.mxu0 %v800
    %832 = vmatprep.subr.mxu0 0.0
    %833 = vmatpush1.msra.mxu0 %v801
    %834 = vmatprep.subr.mxu0 0.0
    %835 = vmatpush1.msra.mxu0 %v802
    %836 = vmatprep.subr.mxu0 0.0
    %837 = vmatpush1.msra.mxu0 %v803
    %838 = vmatprep.subr.mxu0 0.0
    %839 = vmatpush1.msra.mxu0 %v804
    %840 = vmatprep.subr.mxu0 0.0
    %841 = vmatpush1.msra.mxu0 %v805
    %842 = vmatprep.subr.mxu0 0.0
    %843 = vmatpush1.msra.mxu0 0.0
    %844 = vmatprep.subr.mxu0 0.0
    %845 = vmatpush1.msra.mxu0 0.0
    %846 = vmatprep.subr.mxu0 0.0
    %847 = vmatpush1.msra.mxu0 0.0
    %848 = vmatprep.subr.mxu0 0.0
    %849 = vmatpush1.msra.mxu0 0.0
    %850 = vmatprep.subr.mxu0 0.0
    %851 = vmatpush1.msra.mxu0 0.0
    %852 = vmatprep.subr.mxu0 0.0
    %853 = vmatpush1.msra.mxu0 0.0
    %854 = vmatprep.subr.mxu0 0.0
    %855 = vmatpush1.msra.mxu0 0.0
    %856 = vmatprep.subr.mxu0 0.0
    %857 = vmatpush1.msra.mxu0 0.0
    %858 = vmatprep.subr.mxu0 0.0
    %859 = vmatpush1.msra.mxu0 0.0
    %860 = vmatprep.subr.mxu0 0.0
    %861 = vmatpush1.msra.mxu0 0.0
    %862 = vmatprep.subr.mxu0 0.0
    %863 = vmatpush1.msra.mxu0 0.0
    %864 = vmatprep.subr.mxu0 0.0
    %865 = vmatpush1.msra.mxu0 0.0
    %866 = vmatprep.subr.mxu0 0.0
    %867 = vmatpush1.msra.mxu0 0.0
    %868 = vmatprep.subr.mxu0 0.0
    %869 = vmatpush1.msra.mxu0 0.0
    %870 = vmatprep.subr.mxu0 0.0
    %871 = vmatpush1.msra.mxu0 0.0
    %872 = vmatprep.subr.mxu0 0.0
    %873 = vmatpush1.msra.mxu0 0.0
    %874 = vmatprep.mubr.f32.mxu0 0.0
    %875 = vmatmul.mubr.f32.gmra.mrb[0].mxu0 %v808
    %v876 = vpop.f32.mrb[0].mxu0
    %v877 = vadd.f32 %v806, %v876
    %v878 = vpop.f32.mrb[0].mxu0
    %879 = vdwg.mxu0
    %v880 = vlaneseq
    %v881 = vand.u32 %v880, 127
    %vm882 = vcmp.lt.s32.totalorder %v881, 5
    %v883 = vsel %vm882, %v877, -1e+30
    %vm884 = vcmask 1040384
    %v885 = vsel %vm884, %v883, -inf
    %886 = vmax.xlane.f32.xlu0 %v885
    %v887 = vpop.xlane.xlu0 %886
    %v888 = vsub.f32 %v883, %v887
    %v889 = vmul.f32 %v888, 1.442695
    %v890 = vpow.pop %v889
    %v891 = vsel %vm882, %v890, 0.0
    %v892 = vsel %vm884, %v891, 0.0
    %893 = vadd.xlane.f32.xlu0 %v892
    %v894 = vpop.xlane.xlu0 %893
    %v895 = vrcp.pop %v894
    %v896 = vmul.f32 %v891, %v895
    %897 = vst [vmem:[#allocation8] sm:$0x1] %v896
    // Predicated region
    $region38: #{_seqrnn_apply.1} parent=1 // pred_check
      _
    $region39: #{_seqrnn_apply.1} parent=1 // pred_check_branch
      %899 = sbr.rel (0) target = $region41
    $region40: #{_seqrnn_apply.1} parent=1 // pred_region
      %s901 = ssub.s32 16, 16
      %902 = vsyncadd [#allocation4], %s901
      %s904 = sshll.u32 [#allocation8], 4
      %s905 = int_to_ptr.vmem [resolvable:$true] %s904
      %907 = dma.vmem_to_hbm [thread:$0]  %s905, 16, %s6, [#allocation4]
    $region41: #{_seqrnn_apply.1} parent=1 // pred_fallthru
      _
    // Predicated region
    $region42: #{_seqrnn_apply.1} parent=1 // pred_check
      _
    $region43: #{_seqrnn_apply.1} parent=1 // pred_check_branch
      %909 = sbr.rel (0) target = $region45
    $region44: #{_seqrnn_apply.1} parent=1 // pred_region
      %910 = dma.done [#allocation4], 16
    $region45: #{_seqrnn_apply.1} parent=1 // pred_fallthru
      _
    %911 = vsyncpa [#allocation3], 1
    %912 = vsyncpa [#allocation6], 1
    %913 = vsyncpa [#allocation4], 1

</llo_original>
